<compile_context>
chip_gen: v7x
topology: tpu7x:2x2x1
jax: 0.10.0
libtpu: 0.0.40
codegen_flags: <defaults>
</compile_context>

<pallas_src>
import jax
import jax.numpy as jnp
from jax.experimental import pallas as pl
from jax.experimental.pallas import tpu as pltpu


def _make_rotary_kernel(r):
    """Kernel closure; r = positions packed per lane-dense output row (static)."""

    def kernel(t_ref, w_ref, o_ref):
        # t_ref: (tile_g, r)       positions (any dtype; cast here)
        # w_ref: (r, r*dim)        resident constant, W[j, j*dim+d] = inv_full[d]
        # o_ref: (tile_g, r*dim)   float32 output tile (lane-dense)
        t = t_ref[...].astype(jnp.float32)
        if r > 8:
            # Large packing factor (tiny dim): one MXU matmul instead of many
            # VPU madds; still trivially hidden under the output-write DMA.
            o_ref[...] = jnp.dot(t, w_ref[...],
                                 preferred_element_type=jnp.float32)
        else:
            acc = t[:, 0:1] * w_ref[0:1, :]        # (tile_g,1) * (1, r*dim)
            for j in range(1, r):                  # r small & static -> unrolled
                acc = acc + t[:, j:j + 1] * w_ref[j:j + 1, :]
            o_ref[...] = acc

    return kernel


def sinusoidal_embeddings(t, dim, theta=10000.0, *,
                          target_block_bytes=2 * 1024 * 1024):
    """t: positions, any shape/dtype. Returns array of shape t.shape + (dim,), float32."""
    dim = int(dim)
    assert dim % 2 == 0, "dim must be even (as assumed by the PyTorch module)"
    lead_shape = tuple(int(s) for s in t.shape)
    R = 1
    for s in lead_shape:
        R *= s
    R = max(R, 1)

    # Lane-density factor: pack r consecutive positions per stored row so the
    # row width r*dim equals 128 lanes (unmasked stores). Fall back to r=1 when
    # dim is already 128-aligned, dim doesn't divide 128, or R isn't divisible.
    if dim % 128 == 0:
        r = 1
    elif 128 % dim == 0 and R % (128 // dim) == 0:
        r = 128 // dim
    else:
        r = 1
    lane_w = r * dim
    G = R // r

    # Deterministic "parameters" (module __init__), with the einops repeat
    # '(d r)', r=2 folded in: inv_full[2k] = inv_full[2k+1] = inv_freq[k].
    inv_freq = 1.0 / (theta ** (jnp.arange(0, dim, 2, dtype=jnp.float32) / dim))
    inv_full = jnp.repeat(inv_freq, 2).reshape(1, dim)                 # (1, dim)
    if r == 1:
        w = inv_full                                                   # (1, dim)
    else:
        # W[j, j*dim + d] = inv_full[d], zeros elsewhere (exact-zero adds in-kernel).
        w = jnp.kron(jnp.eye(r, dtype=jnp.float32), inv_full)          # (r, r*dim)

    t2 = t.reshape(G, r)       # free metadata reshape; positions land on sublanes

    # Rows (groups) per grid step: ~2 MiB output block -> a few MiB double
    # buffered (fits every generation's scoped VMEM with huge headroom) while
    # tiles are big enough to keep the output DMA pipeline at the HBM roofline.
    tile_g = max(1, target_block_bytes // (lane_w * 4))
    if tile_g >= G:
        tile_g = G                          # full dim -> always a legal block
    else:
        tile_g = max(8, (tile_g // 8) * 8)  # keep sublane dim a multiple of 8
    grid = (pl.cdiv(G, tile_g),)            # tail block is masked by Pallas

    out2d = pl.pallas_call(
        _make_rotary_kernel(r),
        out_shape=jax.ShapeDtypeStruct((G, lane_w), jnp.float32),
        grid=grid,
        in_specs=[
            pl.BlockSpec((tile_g, r), lambda i: (i, 0)),    # positions tile
            pl.BlockSpec((r, lane_w), lambda i: (0, 0)),    # resident constant
        ],
        out_specs=pl.BlockSpec((tile_g, lane_w), lambda i: (i, 0)),
        compiler_params=pltpu.CompilerParams(
            dimension_semantics=("parallel",),              # both TCs on v7x
            vmem_limit_bytes=32 * 1024 * 1024,
        ),
        cost_estimate=pl.CostEstimate(
            flops=R * dim,
            transcendentals=0,
            bytes_accessed=4 * (R + r * lane_w + R * dim),
        ),
    )(t2, w)

    # (G, r*dim) is exactly the row-major layout of (..., dim): free reshape.
    # TODO(synk): if downstream rotary consumers accept bf16, emit bf16 to halve
    # HBM write bytes (kept f32 here to match the PyTorch .float() contract).
    return out2d.reshape(*lead_shape, dim)


def _reference(t, dim, theta=10000.0):
    inv_freq = 1.0 / (theta ** (jnp.arange(0, dim, 2, dtype=jnp.float32) / dim))
    freqs = t[..., None].astype(jnp.float32) * inv_freq
    return jnp.repeat(freqs, 2, axis=-1)


if __name__ == "__main__":
    key = jax.random.PRNGKey(0)
    k1, k2, k3 = jax.random.split(key, 3)

    # Case 1: module-like shapes (batch of position sequences), dim=32.
    B, N, DIM = 2, 8, 32
    t1 = jax.random.uniform(k1, (B, N), dtype=jnp.float32, minval=0.0, maxval=10.0)
    out1 = jax.block_until_ready(sinusoidal_embeddings(t1, DIM))
    assert out1.shape == (B, N, DIM)
    assert out1.dtype == jnp.float32
    assert jnp.allclose(out1, _reference(t1, DIM), atol=1e-6, rtol=1e-6)

    # Case 2: row count not divisible by the packing factor -> r=1 fallback path.
    t2 = jax.random.uniform(k2, (1, 5), dtype=jnp.float32, minval=0.0, maxval=10.0)
    out2 = jax.block_until_ready(sinusoidal_embeddings(t2, DIM))
    assert jnp.allclose(out2, _reference(t2, DIM), atol=1e-6, rtol=1e-6)

    # Case 3: multi-step pipelined grid with a ragged (masked) tail block.
    # Small target_block_bytes only to exercise the tiled path at demo size.
    t3 = jax.random.uniform(k3, (4, 300), dtype=jnp.float32, minval=0.0, maxval=10.0)
    out3 = jax.block_until_ready(
        sinusoidal_embeddings(t3, DIM, target_block_bytes=64 * 1024))
    assert jnp.allclose(out3, _reference(t3, DIM), atol=1e-6, rtol=1e-6)

    print("KERNEL_OK")
</pallas_src>

<mosaic_0001>
module attributes {stable_mosaic.version = 11 : i64} {
  func.func @kernel(%arg0: i32, %arg1: memref<4x4xf32, #tpu.memory_space<vmem>>, %arg2: memref<4x128xf32, #tpu.memory_space<vmem>>, %arg3: memref<4x128xf32, #tpu.memory_space<vmem>>) attributes {dimension_semantics = [#tpu.dimension_semantics<parallel>], iteration_bounds = array<i64: 1>, scalar_prefetch = 0 : i64, scratch_operands = 0 : i64, tpu.core_type = #tpu.core_type<tc>, window_params = [{transform_indices = @transform_0, window_bounds = array<i64: 4, 4>}, {pipeline_mode = #tpu.pipeline_mode<synchronous>, transform_indices = @transform_1, window_bounds = array<i64: 4, 128>}, {transform_indices = @transform_2, window_bounds = array<i64: 4, 128>}]} {
    %c0 = arith.constant 0 : index
    %c0_0 = arith.constant 0 : index
    %0 = vector.load %arg1[%c0, %c0_0] : memref<4x4xf32, #tpu.memory_space<vmem>>, vector<4x4xf32>
    %1 = vector.extract_strided_slice %0 {offsets = [0, 0], sizes = [4, 1], strides = [1, 1]} : vector<4x4xf32> to vector<4x1xf32>
    %c0_1 = arith.constant 0 : index
    %c0_2 = arith.constant 0 : index
    %2 = vector.load %arg2[%c0_1, %c0_2] : memref<4x128xf32, #tpu.memory_space<vmem>>, vector<1x128xf32>
    %3 = vector.broadcast %1 : vector<4x1xf32> to vector<4x128xf32>
    %4 = vector.broadcast %2 : vector<1x128xf32> to vector<4x128xf32>
    %5 = arith.mulf %3, %4 : vector<4x128xf32>
    %6 = vector.extract_strided_slice %0 {offsets = [0, 1], sizes = [4, 1], strides = [1, 1]} : vector<4x4xf32> to vector<4x1xf32>
    %c1 = arith.constant 1 : index
    %c0_3 = arith.constant 0 : index
    %7 = vector.load %arg2[%c1, %c0_3] : memref<4x128xf32, #tpu.memory_space<vmem>>, vector<1x128xf32>
    %8 = vector.broadcast %6 : vector<4x1xf32> to vector<4x128xf32>
    %9 = vector.broadcast %7 : vector<1x128xf32> to vector<4x128xf32>
    %10 = arith.mulf %8, %9 : vector<4x128xf32>
    %11 = arith.addf %5, %10 : vector<4x128xf32>
    %12 = vector.extract_strided_slice %0 {offsets = [0, 2], sizes = [4, 1], strides = [1, 1]} : vector<4x4xf32> to vector<4x1xf32>
    %c2 = arith.constant 2 : index
    %c0_4 = arith.constant 0 : index
    %13 = vector.load %arg2[%c2, %c0_4] : memref<4x128xf32, #tpu.memory_space<vmem>>, vector<1x128xf32>
    %14 = vector.broadcast %12 : vector<4x1xf32> to vector<4x128xf32>
    %15 = vector.broadcast %13 : vector<1x128xf32> to vector<4x128xf32>
    %16 = arith.mulf %14, %15 : vector<4x128xf32>
    %17 = arith.addf %11, %16 : vector<4x128xf32>
    %18 = vector.extract_strided_slice %0 {offsets = [0, 3], sizes = [4, 1], strides = [1, 1]} : vector<4x4xf32> to vector<4x1xf32>
    %c3 = arith.constant 3 : index
    %c0_5 = arith.constant 0 : index
    %19 = vector.load %arg2[%c3, %c0_5] : memref<4x128xf32, #tpu.memory_space<vmem>>, vector<1x128xf32>
    %20 = vector.broadcast %18 : vector<4x1xf32> to vector<4x128xf32>
    %21 = vector.broadcast %19 : vector<1x128xf32> to vector<4x128xf32>
    %22 = arith.mulf %20, %21 : vector<4x128xf32>
    %23 = arith.addf %17, %22 : vector<4x128xf32>
    %c0_6 = arith.constant 0 : index
    %c0_7 = arith.constant 0 : index
    %24 = vector.load %arg3[%c0_6, %c0_7] : memref<4x128xf32, #tpu.memory_space<vmem>>, vector<4x128xf32>
    tpu.vector_store %arg3[%c0_6, %c0_7], %23 {strides = array<i32>} : memref<4x128xf32, #tpu.memory_space<vmem>>, vector<4x128xf32>,
    return
  }
  func.func @transform_0(%arg0: i32) -> (i32, i32) {
    %c0_i32 = arith.constant 0 : i32
    %c0_i32_0 = arith.constant 0 : i32
    return %arg0, %c0_i32 : i32, i32
  }
  func.func @transform_1(%arg0: i32) -> (i32, i32) {
    %c0_i32 = arith.constant 0 : i32
    %c0_i32_0 = arith.constant 0 : i32
    %c0_i32_1 = arith.constant 0 : i32
    return %c0_i32, %c0_i32_0 : i32, i32
  }
  func.func @transform_2(%arg0: i32) -> (i32, i32) {
    %c0_i32 = arith.constant 0 : i32
    %c0_i32_0 = arith.constant 0 : i32
    return %arg0, %c0_i32 : i32, i32
  }
}

</mosaic_0001>

<llo_original>
// kernel: tpu_custom_call.1
$region0: #{tpu_custom_call.1}
  #allocation0 [shape = 'u32[]', space=smem, size = 0x4, offset = 0x4, fixed_abs, tag = 'smem constant byte address 0x4 - core index']
  #allocation1 [shape = 'u32[144,128]{1,0:T(1,128)}', space=vmem, size = 0x12000, scoped, tag = 'internal scratch']
  %s0 = inlined_call_operand.hbm [shape: f32[4,4], index: 0, kind: input, shape index: {}]
  %s1 = inlined_call_operand.hbm [shape: f32[4,128], index: 1, kind: input, shape index: {}]
  %s2 = inlined_call_operand.hbm [shape: f32[4,128], index: 2, kind: output, shape index: {}]
  %s3 = sld [smem:[#allocation0]]
  $region26: #{tpu_custom_call.1} parent=0
    _
  %s5 = ssub.s32 1, %s3
  %s6 = scalar_select 0, %s5, %s3
  $region1: #{tpu_custom_call.1} parent=0
    #allocation2 [shape = 'u8[2048]{0}', space=vmem, size = 0x800, scoped, tag = 'input window, operand 0, single buffered']
    #allocation3 [shape = 's32[1]{0}', space=sflag, size = 0x4, scoped, tag = 'scoped memory for tpu_custom_call.1']
    #allocation4 [shape = 's32[1]{0}', space=sflag, size = 0x4, scoped, tag = 'scoped memory for tpu_custom_call.1']
    #allocation5 [shape = 'u8[2048]{0}', space=vmem, size = 0x800, scoped, tag = 'input window, operand 1, single buffered']
    #allocation6 [shape = 's32[1]{0}', space=sflag, size = 0x4, scoped, tag = 'scoped memory for tpu_custom_call.1']
    #allocation7 [shape = 'u8[2048]{0}', space=vmem, size = 0x800, scoped, tag = 'output window, operand 0, single buffered']
    %7 = vsyncpa [#allocation3], 0
    %8 = vsyncpa [#allocation6], 0
    %9 = vsyncpa [#allocation4], 0
    // Predicated region
    $region2: #{tpu_custom_call.1} parent=1 // pred_check
      _
    $region3: #{tpu_custom_call.1} parent=1 // pred_check_branch
      %11 = sbr.rel (0) target = $region5
    $region4: #{tpu_custom_call.1} parent=1 // pred_region
      %s13 = ssub.s32 64, 64
      %14 = vsyncadd [#allocation3], %s13
      %s16 = sshll.u32 [#allocation2], 4
      %s17 = int_to_ptr.vmem [resolvable:$true] %s16
      %19 = dma.hbm_to_vmem [thread:$0]  %s0, 64, %s17, [#allocation3]
    $region5: #{tpu_custom_call.1} parent=1 // pred_fallthru
      _
    // Predicated region
    $region6: #{tpu_custom_call.1} parent=1 // pred_check
      _
    $region7: #{tpu_custom_call.1} parent=1 // pred_check_branch
      %21 = sbr.rel (0) target = $region9
    $region8: #{tpu_custom_call.1} parent=1 // pred_region
      %s23 = ssub.s32 64, 64
      %24 = vsyncadd [#allocation6], %s23
      %s26 = sshll.u32 [#allocation5], 4
      %s27 = int_to_ptr.vmem [resolvable:$true] %s26
      %29 = dma.hbm_to_vmem [thread:$0]  %s1, 64, %s27, [#allocation6]
    $region9: #{tpu_custom_call.1} parent=1 // pred_fallthru
      _
    // Predicated region
    $region10: #{tpu_custom_call.1} parent=1 // pred_check
      _
    $region11: #{tpu_custom_call.1} parent=1 // pred_check_branch
      %31 = sbr.rel (0) target = $region13
    $region12: #{tpu_custom_call.1} parent=1 // pred_region
      %32 = dma.done [#allocation3], 64
    $region13: #{tpu_custom_call.1} parent=1 // pred_fallthru
      _
    // Predicated region
    $region14: #{tpu_custom_call.1} parent=1 // pred_check
      _
    $region15: #{tpu_custom_call.1} parent=1 // pred_check_branch
      %34 = sbr.rel (0) target = $region17
    $region16: #{tpu_custom_call.1} parent=1 // pred_region
      %35 = dma.done [#allocation6], 64
    $region17: #{tpu_custom_call.1} parent=1 // pred_fallthru
      _
    %v36 = vld [vmem:[#allocation2] sm:$0xf]
    %v37 = vld [vmem:[#allocation5] sm:$0x1]
    %39 = vset.pattern.permute.xlu0 0
    %40 = vperm.xlu0 %39, %v36
    %v41 = vpop.permute.xlu0 %40
    %v43 = vlaneseq
    %v44 = vshrl.u32 %v43, 7
    %v45 = vsub.s32 0, %v44
    %v46 = vrot.slane %v37, %v45
    %v47 = vmul.f32 %v41, %v46
    %v48 = vld [vmem:[#allocation5 + $0x1] sm:$0x1]
    %49 = vset.pattern.permute.xlu0 1
    %50 = vperm.xlu0 %49, %v36
    %v51 = vpop.permute.xlu0 %50
    %v53 = vlaneseq
    %v54 = vshrl.u32 %v53, 7
    %v55 = vsub.s32 0, %v54
    %v56 = vrot.slane %v48, %v55
    %v57 = vmul.f32 %v51, %v56
    %v58 = vadd.f32 %v47, %v57
    %v59 = vld [vmem:[#allocation5 + $0x2] sm:$0x1]
    %60 = vset.pattern.permute.xlu0 2
    %61 = vperm.xlu0 %60, %v36
    %v62 = vpop.permute.xlu0 %61
    %v64 = vlaneseq
    %v65 = vshrl.u32 %v64, 7
    %v66 = vsub.s32 0, %v65
    %v67 = vrot.slane %v59, %v66
    %v68 = vmul.f32 %v62, %v67
    %v69 = vadd.f32 %v58, %v68
    %v70 = vld [vmem:[#allocation5 + $0x3] sm:$0x1]
    %71 = vset.pattern.permute.xlu0 3
    %72 = vperm.xlu0 %71, %v36
    %v73 = vpop.permute.xlu0 %72
    %v75 = vlaneseq
    %v76 = vshrl.u32 %v75, 7
    %v77 = vsub.s32 0, %v76
    %v78 = vrot.slane %v70, %v77
    %v79 = vmul.f32 %v73, %v78
    %v80 = vadd.f32 %v69, %v79
    %81 = vst [vmem:[#allocation7] sm:$0xf] %v80
    // Predicated region
    $region18: #{tpu_custom_call.1} parent=1 // pred_check
      _
    $region19: #{tpu_custom_call.1} parent=1 // pred_check_branch
      %83 = sbr.rel (0) target = $region21
    $region20: #{tpu_custom_call.1} parent=1 // pred_region
      %s85 = ssub.s32 64, 64
      %86 = vsyncadd [#allocation4], %s85
      %s88 = sshll.u32 [#allocation7], 4
      %s89 = int_to_ptr.vmem [resolvable:$true] %s88
      %91 = dma.vmem_to_hbm [thread:$0]  %s89, 64, %s2, [#allocation4]
    $region21: #{tpu_custom_call.1} parent=1 // pred_fallthru
      _
    // Predicated region
    $region22: #{tpu_custom_call.1} parent=1 // pred_check
      _
    $region23: #{tpu_custom_call.1} parent=1 // pred_check_branch
      %93 = sbr.rel (0) target = $region25
    $region24: #{tpu_custom_call.1} parent=1 // pred_region
      %94 = dma.done [#allocation4], 64
    $region25: #{tpu_custom_call.1} parent=1 // pred_fallthru
      _
    %95 = vsyncpa [#allocation3], 1
    %96 = vsyncpa [#allocation6], 1
    %97 = vsyncpa [#allocation4], 1

</llo_original>
